<compile_context>
chip_gen: v7x
topology: tpu7x:2x2x1
jax: 0.10.0
libtpu: 0.0.40
codegen_flags: <defaults>
</compile_context>

<pallas_src>
import functools

import jax
import jax.numpy as jnp
import numpy as np
from jax import lax
from jax.experimental import pallas as pl
from jax.experimental.pallas import tpu as pltpu


def _resblock_kernel(x_ref, w1_ref, w2_ref, aux_ref, out_ref,
                     *, W, C_pad, KH, KW, P):
    """One batch-block per grid step, lane-dense on BN*H*W.

    x_ref  : (1, C_pad, LANE)  zero-channel-padded input slab (f32)
    w1_ref : (C_pad, K)        conv1 weights, im2col layout + bias column
    w2_ref : (C_pad, K)        conv2 weights, same layout
    aux_ref: (K, LANE)         constant: per-tap 0/1 masks (replicated over the
                               C_pad rows of each tap block) + bias "ones row"
    out_ref: (1, C_pad, LANE)  output slab
    """
    x = x_ref[0]                                   # (C_pad, LANE), lanes = BN*HW
    lane = x.shape[-1]
    aux = aux_ref[...]                             # (K, LANE) constant masks
    w1 = w1_ref[...]
    w2 = w2_ref[...]
    ones_blk = jnp.ones((C_pad, lane), jnp.float32)   # splat; bias-row carrier

    def conv(inp, wmat):
        blocks = []
        for kh in range(KH):
            for kw in range(KW):
                s = (kh - P) * W + (kw - P)        # flat source offset of tap
                if s == 0:
                    blocks.append(inp)             # center tap, no rotate
                else:
                    # roll: out[l] = in[(l - shift) % n]; want in[l + s] -> shift = -s
                    blocks.append(pltpu.roll(inp, shift=(-s) % lane, axis=1))
        blocks.append(ones_blk)                    # bias block (row 0 kept by aux)
        # Every block is a whole (C_pad=8, LANE) sublane tile -> aligned concat.
        patch = jnp.concatenate(blocks, axis=0) * aux       # (K, LANE)
        # Single MXU dot per conv; bias comes along via the trailing column.
        return jnp.dot(wmat, patch, preferred_element_type=jnp.float32)

    y1 = jnp.maximum(conv(x, w1), 0.0)             # relu(conv1(x))
    y2 = conv(y1, w2)                              # conv2(.)
    out_ref[0] = jnp.maximum(y2 + x, 0.0).astype(out_ref.dtype)


def resblock_pallas(x_nchw, w1_oihw, b1, w2_oihw, b2, *, padding):
    """ResBlock forward. x_nchw: (N, C, H, W) float32, weights OIHW like torch."""
    N, C, H, W = x_nchw.shape
    KO, KI, KH, KW = w1_oihw.shape
    assert KO == C and KI == C
    # stride=1 and 'same' padding are required for the residual add anyway.
    assert KH == 2 * padding + 1 and KW == 2 * padding + 1
    HW = H * W
    KK = KH * KW
    C_pad = ((C + 7) // 8) * 8                    # round channels up to a sublane tile
    K = (KK + 1) * C_pad                          # im2col rows + bias block

    # --- batch blocking: 2 balanced grid steps (v7x: one per TC), BN images
    # packed into the lane axis per step, capped so the patch stays in vregs.
    num_steps = 2 if N >= 2 else 1
    BN = -(-N // num_steps)
    BN = min(BN, max(1, 512 // HW))               # keep patch <= ~40 vregs
    num_steps = -(-N // BN)
    N_padded = num_steps * BN
    LANE = BN * HW

    # --- input: pad channels (and batch if ragged), pack BN images per lane slab.
    x = x_nchw.astype(jnp.float32)
    x = jnp.pad(x, ((0, N_padded - N), (0, C_pad - C), (0, 0), (0, 0)))
    x3 = (x.reshape(num_steps, BN, C_pad, HW)
            .transpose(0, 2, 1, 3)
            .reshape(num_steps, C_pad, LANE))

    # --- weights: OIHW -> (O, kk, I), zero-pad both channel dims to C_pad,
    # flatten to im2col columns, append the bias column block.
    def to_mat(w, b):
        wt = jnp.transpose(w.astype(jnp.float32), (0, 2, 3, 1)).reshape(C, KK, C)
        wt = jnp.pad(wt, ((0, C_pad - C), (0, 0), (0, C_pad - C)))
        wcols = wt.reshape(C_pad, KK * C_pad)
        bcol = jnp.pad(b.astype(jnp.float32).reshape(C, 1),
                       ((0, C_pad - C), (0, C_pad - 1)))     # (C_pad, C_pad), col0 = bias
        return jnp.concatenate([wcols, bcol], axis=1)        # (C_pad, K)

    w1m = to_mat(w1_oihw, b1)
    w2m = to_mat(w2_oihw, b2)

    # --- constant aux: per-tap validity masks (trace-time numpy, no VPU work)
    # replicated across each C_pad-row tap block, plus the bias "ones row".
    lane_idx = np.arange(LANE)
    w_i = lane_idx % W
    h_i = (lane_idx // W) % H                     # %H zeroes cross-image roll wrap
    aux_np = np.zeros((K, LANE), np.float32)
    for kk in range(KK):
        dh = kk // KW - padding
        dw = kk % KW - padding
        valid = ((w_i + dw >= 0) & (w_i + dw < W) &
                 (h_i + dh >= 0) & (h_i + dh < H)).astype(np.float32)
        aux_np[kk * C_pad:(kk + 1) * C_pad, :] = valid[None, :]
    aux_np[KK * C_pad, :] = 1.0                   # bias row
    aux = jnp.asarray(aux_np)

    kernel = functools.partial(_resblock_kernel,
                               W=W, C_pad=C_pad, KH=KH, KW=KW, P=padding)

    out3 = pl.pallas_call(
        kernel,
        out_shape=jax.ShapeDtypeStruct((num_steps, C_pad, LANE), jnp.float32),
        grid=(num_steps,),
        in_specs=[
            pl.BlockSpec((1, C_pad, LANE), lambda n: (n, 0, 0)),   # x slab
            pl.BlockSpec((C_pad, K), lambda n: (0, 0)),            # w1 (+bias col)
            pl.BlockSpec((C_pad, K), lambda n: (0, 0)),            # w2 (+bias col)
            pl.BlockSpec((K, LANE), lambda n: (0, 0)),             # masks / ones row
        ],
        out_specs=pl.BlockSpec((1, C_pad, LANE), lambda n: (n, 0, 0)),
        compiler_params=pltpu.CompilerParams(
            dimension_semantics=("parallel",),       # both TCs on v7x
            vmem_limit_bytes=64 * 1024 * 1024),      # headroom if blocks grow (v5e default is 16 MiB)
    )(x3, w1m, w2m, aux)

    # Unpack lanes -> batch, drop channel/batch padding.
    out = (out3.reshape(num_steps, C_pad, BN, HW)
               .transpose(0, 2, 1, 3)
               .reshape(N_padded, C_pad, H, W))
    return out[:N, :C]


def resblock_reference(x_nchw, w1_oihw, b1, w2_oihw, b2, *, padding):
    """Pure-JAX reference matching nn.Conv2d semantics (NCHW/OIHW)."""
    def conv(x, w, b):
        y = lax.conv_general_dilated(
            x, w, window_strides=(1, 1),
            padding=[(padding, padding), (padding, padding)],
            dimension_numbers=("NCHW", "OIHW", "NCHW"))
        return y + b.reshape(1, -1, 1, 1)

    out = conv(x_nchw, w1_oihw, b1)
    out = jnp.maximum(out, 0.0)
    out = conv(out, w2_oihw, b2)
    out = out + x_nchw
    return jnp.maximum(out, 0.0)


if __name__ == "__main__":
    # ResBlock(channels=4, kernel_size=3, stride=1, padding=1)
    channels, kernel_size, stride, padding = 4, 3, 1, 1
    assert stride == 1  # residual add requires spatially preserving convs
    N, H, W = 2, 16, 16

    key = jax.random.PRNGKey(0)
    kx, k1w, k1b, k2w, k2b = jax.random.split(key, 5)

    # Deterministic init mimicking torch Conv2d defaults (uniform +/- 1/sqrt(fan_in))
    fan_in = channels * kernel_size * kernel_size
    bound = 1.0 / np.sqrt(fan_in)
    wshape = (channels, channels, kernel_size, kernel_size)  # OIHW, like torch
    w1 = jax.random.uniform(k1w, wshape, jnp.float32, -bound, bound)
    b1 = jax.random.uniform(k1b, (channels,), jnp.float32, -bound, bound)
    w2 = jax.random.uniform(k2w, wshape, jnp.float32, -bound, bound)
    b2 = jax.random.uniform(k2b, (channels,), jnp.float32, -bound, bound)

    x = jax.random.normal(kx, (N, channels, H, W), jnp.float32)  # NCHW, like torch

    out = resblock_pallas(x, w1, b1, w2, b2, padding=padding)
    out = jax.block_until_ready(out)

    ref = resblock_reference(x, w1, b1, w2, b2, padding=padding)
    np.testing.assert_allclose(np.asarray(out), np.asarray(ref),
                               rtol=1e-4, atol=1e-4)

    print("KERNEL_OK")
</pallas_src>

<mosaic_0001>
module attributes {stable_mosaic.version = 11 : i64} {
  func.func @_resblock_kernel(%arg0: i32, %arg1: memref<1x8x256xf32, #tpu.memory_space<vmem>>, %arg2: memref<8x80xf32, #tpu.memory_space<vmem>>, %arg3: memref<8x80xf32, #tpu.memory_space<vmem>>, %arg4: memref<80x256xf32, #tpu.memory_space<vmem>>, %arg5: memref<1x8x256xf32, #tpu.memory_space<vmem>>) attributes {dimension_semantics = [#tpu.dimension_semantics<parallel>], iteration_bounds = array<i64: 2>, scalar_prefetch = 0 : i64, scratch_operands = 0 : i64, tpu.core_type = #tpu.core_type<tc>, window_params = [{transform_indices = @transform_0, window_bounds = array<i64: 1, 8, 256>}, {pipeline_mode = #tpu.pipeline_mode<synchronous>, transform_indices = @transform_1, window_bounds = array<i64: 8, 80>}, {pipeline_mode = #tpu.pipeline_mode<synchronous>, transform_indices = @transform_2, window_bounds = array<i64: 8, 80>}, {pipeline_mode = #tpu.pipeline_mode<synchronous>, transform_indices = @transform_3, window_bounds = array<i64: 80, 256>}, {transform_indices = @transform_4, window_bounds = array<i64: 1, 8, 256>}]} {
    %c0 = arith.constant 0 : index
    %c0_0 = arith.constant 0 : index
    %c0_1 = arith.constant 0 : index
    %0 = vector.load %arg1[%c0, %c0_0, %c0_1] : memref<1x8x256xf32, #tpu.memory_space<vmem>>, vector<1x8x256xf32>
    %1 = vector.shape_cast %0 : vector<1x8x256xf32> to vector<8x256xf32>
    %c0_2 = arith.constant 0 : index
    %c0_3 = arith.constant 0 : index
    %2 = vector.load %arg4[%c0_2, %c0_3] : memref<80x256xf32, #tpu.memory_space<vmem>>, vector<80x256xf32>
    %c0_4 = arith.constant 0 : index
    %c0_5 = arith.constant 0 : index
    %3 = vector.load %arg2[%c0_4, %c0_5] : memref<8x80xf32, #tpu.memory_space<vmem>>, vector<8x80xf32>
    %c0_6 = arith.constant 0 : index
    %c0_7 = arith.constant 0 : index
    %4 = vector.load %arg3[%c0_6, %c0_7] : memref<8x80xf32, #tpu.memory_space<vmem>>, vector<8x80xf32>
    %cst = arith.constant 1.000000e+00 : f32
    %5 = vector.broadcast %cst : f32 to vector<8x256xf32>
    %c17_i32 = arith.constant 17 : i32
    %6 = tpu.dynamic_rotate %1 by %c17_i32 dim 1 : vector<8x256xf32>, i32 -> vector<8x256xf32>
    %c16_i32 = arith.constant 16 : i32
    %7 = tpu.dynamic_rotate %1 by %c16_i32 dim 1 : vector<8x256xf32>, i32 -> vector<8x256xf32>
    %c15_i32 = arith.constant 15 : i32
    %8 = tpu.dynamic_rotate %1 by %c15_i32 dim 1 : vector<8x256xf32>, i32 -> vector<8x256xf32>
    %c1_i32 = arith.constant 1 : i32
    %9 = tpu.dynamic_rotate %1 by %c1_i32 dim 1 : vector<8x256xf32>, i32 -> vector<8x256xf32>
    %c255_i32 = arith.constant 255 : i32
    %10 = tpu.dynamic_rotate %1 by %c255_i32 dim 1 : vector<8x256xf32>, i32 -> vector<8x256xf32>
    %c241_i32 = arith.constant 241 : i32
    %11 = tpu.dynamic_rotate %1 by %c241_i32 dim 1 : vector<8x256xf32>, i32 -> vector<8x256xf32>
    %c240_i32 = arith.constant 240 : i32
    %12 = tpu.dynamic_rotate %1 by %c240_i32 dim 1 : vector<8x256xf32>, i32 -> vector<8x256xf32>
    %c239_i32 = arith.constant 239 : i32
    %13 = tpu.dynamic_rotate %1 by %c239_i32 dim 1 : vector<8x256xf32>, i32 -> vector<8x256xf32>
    %14 = tpu.concatenate %6, %7, %8, %9, %1, %10, %11, %12, %13, %5 in 0 : vector<8x256xf32>, vector<8x256xf32>, vector<8x256xf32>, vector<8x256xf32>, vector<8x256xf32>, vector<8x256xf32>, vector<8x256xf32>, vector<8x256xf32>, vector<8x256xf32>, vector<8x256xf32> -> vector<80x256xf32>
    %15 = arith.mulf %14, %2 : vector<80x256xf32>
    %cst_8 = arith.constant dense<0.000000e+00> : vector<8x256xf32>
    %16 = tpu.matmul %3, %15, %cst_8 {dimension_numbers = #tpu.dot_dimension_numbers<[1], [0], [0], [1], [0, 0, 1, 1], [], []>} : vector<8x80xf32>, vector<80x256xf32>, vector<8x256xf32> -> vector<8x256xf32>
    %cst_9 = arith.constant 0.000000e+00 : f32
    %17 = vector.broadcast %cst_9 : f32 to vector<8x256xf32>
    %18 = arith.maximumf %16, %17 : vector<8x256xf32>
    %c17_i32_10 = arith.constant 17 : i32
    %19 = tpu.dynamic_rotate %18 by %c17_i32_10 dim 1 : vector<8x256xf32>, i32 -> vector<8x256xf32>
    %c16_i32_11 = arith.constant 16 : i32
    %20 = tpu.dynamic_rotate %18 by %c16_i32_11 dim 1 : vector<8x256xf32>, i32 -> vector<8x256xf32>
    %c15_i32_12 = arith.constant 15 : i32
    %21 = tpu.dynamic_rotate %18 by %c15_i32_12 dim 1 : vector<8x256xf32>, i32 -> vector<8x256xf32>
    %c1_i32_13 = arith.constant 1 : i32
    %22 = tpu.dynamic_rotate %18 by %c1_i32_13 dim 1 : vector<8x256xf32>, i32 -> vector<8x256xf32>
    %c255_i32_14 = arith.constant 255 : i32
    %23 = tpu.dynamic_rotate %18 by %c255_i32_14 dim 1 : vector<8x256xf32>, i32 -> vector<8x256xf32>
    %c241_i32_15 = arith.constant 241 : i32
    %24 = tpu.dynamic_rotate %18 by %c241_i32_15 dim 1 : vector<8x256xf32>, i32 -> vector<8x256xf32>
    %c240_i32_16 = arith.constant 240 : i32
    %25 = tpu.dynamic_rotate %18 by %c240_i32_16 dim 1 : vector<8x256xf32>, i32 -> vector<8x256xf32>
    %c239_i32_17 = arith.constant 239 : i32
    %26 = tpu.dynamic_rotate %18 by %c239_i32_17 dim 1 : vector<8x256xf32>, i32 -> vector<8x256xf32>
    %27 = tpu.concatenate %19, %20, %21, %22, %18, %23, %24, %25, %26, %5 in 0 : vector<8x256xf32>, vector<8x256xf32>, vector<8x256xf32>, vector<8x256xf32>, vector<8x256xf32>, vector<8x256xf32>, vector<8x256xf32>, vector<8x256xf32>, vector<8x256xf32>, vector<8x256xf32> -> vector<80x256xf32>
    %28 = arith.mulf %27, %2 : vector<80x256xf32>
    %cst_18 = arith.constant dense<0.000000e+00> : vector<8x256xf32>
    %29 = tpu.matmul %4, %28, %cst_18 {dimension_numbers = #tpu.dot_dimension_numbers<[1], [0], [0], [1], [0, 0, 1, 1], [], []>} : vector<8x80xf32>, vector<80x256xf32>, vector<8x256xf32> -> vector<8x256xf32>
    %30 = arith.addf %29, %1 : vector<8x256xf32>
    %cst_19 = arith.constant 0.000000e+00 : f32
    %31 = vector.broadcast %cst_19 : f32 to vector<8x256xf32>
    %32 = arith.maximumf %30, %31 : vector<8x256xf32>
    %c0_20 = arith.constant 0 : index
    %c0_21 = arith.constant 0 : index
    %c0_22 = arith.constant 0 : index
    %33 = vector.load %arg5[%c0_20, %c0_21, %c0_22] : memref<1x8x256xf32, #tpu.memory_space<vmem>>, vector<1x8x256xf32>
    %34 = vector.shape_cast %33 : vector<1x8x256xf32> to vector<8x256xf32>
    %35 = vector.shape_cast %32 : vector<8x256xf32> to vector<1x8x256xf32>
    tpu.vector_store %arg5[%c0_20, %c0_21, %c0_22], %35 {strides = array<i32>} : memref<1x8x256xf32, #tpu.memory_space<vmem>>, vector<1x8x256xf32>,
    return
  }
  func.func @transform_0(%arg0: i32) -> (i32, i32, i32) {
    %c0_i32 = arith.constant 0 : i32
    %c0_i32_0 = arith.constant 0 : i32
    %c0_i32_1 = arith.constant 0 : i32
    return %arg0, %c0_i32, %c0_i32_0 : i32, i32, i32
  }
  func.func @transform_1(%arg0: i32) -> (i32, i32) {
    %c0_i32 = arith.constant 0 : i32
    %c0_i32_0 = arith.constant 0 : i32
    %c0_i32_1 = arith.constant 0 : i32
    return %c0_i32, %c0_i32_0 : i32, i32
  }
  func.func @transform_2(%arg0: i32) -> (i32, i32) {
    %c0_i32 = arith.constant 0 : i32
    %c0_i32_0 = arith.constant 0 : i32
    %c0_i32_1 = arith.constant 0 : i32
    return %c0_i32, %c0_i32_0 : i32, i32
  }
  func.func @transform_3(%arg0: i32) -> (i32, i32) {
    %c0_i32 = arith.constant 0 : i32
    %c0_i32_0 = arith.constant 0 : i32
    %c0_i32_1 = arith.constant 0 : i32
    return %c0_i32, %c0_i32_0 : i32, i32
  }
  func.func @transform_4(%arg0: i32) -> (i32, i32, i32) {
    %c0_i32 = arith.constant 0 : i32
    %c0_i32_0 = arith.constant 0 : i32
    %c0_i32_1 = arith.constant 0 : i32
    return %arg0, %c0_i32, %c0_i32_0 : i32, i32, i32
  }
}

</mosaic_0001>

<llo_original>
// kernel: tpu_custom_call.1
$region0: #{tpu_custom_call.1}
  #allocation0 [shape = 'u32[]', space=smem, size = 0x4, offset = 0x4, fixed_abs, tag = 'smem constant byte address 0x4 - core index']
  #allocation1 [shape = 'u32[144,128]{1,0:T(1,128)}', space=vmem, size = 0x12000, scoped, tag = 'internal scratch']
  %s0 = inlined_call_operand.hbm [shape: f32[2,8,256], index: 0, kind: input, shape index: {}]
  %s1 = inlined_call_operand.hbm [shape: f32[8,80], index: 1, kind: input, shape index: {}]
  %s2 = inlined_call_operand.hbm [shape: f32[8,80], index: 2, kind: input, shape index: {}]
  %s3 = inlined_call_operand.hbm [shape: f32[80,256], index: 3, kind: input, shape index: {}]
  %s4 = inlined_call_operand.hbm [shape: f32[2,8,256], index: 4, kind: output, shape index: {}]
  %s5 = sld [smem:[#allocation0]]
  $region65: #{tpu_custom_call.1} parent=0
    _
  %s7 = ssub.s32 1, %s5
  %s8 = scalar_select 0, %s7, %s5
  $region1: #{tpu_custom_call.1} parent=0
    #allocation2 [shape = 'u8[16384]{0}', space=vmem, size = 0x4000, scoped, tag = 'input window, operand 0']
    #allocation3 [shape = 's32[2]{0}', space=sflag, size = 0x8, scoped, tag = 'scoped memory for tpu_custom_call.1']
    #allocation4 [shape = 's32[2]{0}', space=sflag, size = 0x8, scoped, tag = 'scoped memory for tpu_custom_call.1']
    #allocation5 [shape = 'u8[4096]{0}', space=vmem, size = 0x1000, scoped, tag = 'input window, operand 1, single buffered']
    #allocation6 [shape = 's32[1]{0}', space=sflag, size = 0x4, scoped, tag = 'scoped memory for tpu_custom_call.1']
    #allocation7 [shape = 'u8[4096]{0}', space=vmem, size = 0x1000, scoped, tag = 'input window, operand 2, single buffered']
    #allocation8 [shape = 'u8[81920]{0}', space=vmem, size = 0x14000, scoped, tag = 'input window, operand 3, single buffered']
    #allocation9 [shape = 's32[1]{0}', space=sflag, size = 0x4, scoped, tag = 'scoped memory for tpu_custom_call.1']
    #allocation10 [shape = 'u8[16384]{0}', space=vmem, size = 0x4000, scoped, tag = 'output window, operand 0']
    %9 = vsyncpa [#allocation3], 0
    %s10 = scalar_lea.sflag [#allocation3], 1
    %11 = vsyncpa %s10, 0
    %12 = vsyncpa [#allocation6], 0
    %13 = vsyncpa [#allocation9], 0
    %14 = vsyncpa [#allocation4], 0
    %s15 = scalar_lea.sflag [#allocation4], 1
    %16 = vsyncpa %s15, 0
    loop: start=0, step=1, limit=4
    $region2: #{tpu_custom_call.1} parent=1 // loop_pre_header
      _
    $region3: #{tpu_custom_call.1} parent=1 // loop_header
      %s18 = sphi 0, %s22
      %p19 = scmp.ge.s32.totalorder %s18, 4
      %s28 = sphi 0, %s30
      %s31 = sphi 0, %s28
      %s32 = sphi 0, %s31
      %s48 = sphi 0, %s32
      %s52 = sphi 0, %s52
      %s54 = sphi 0, %s52
      %s55 = sphi 0, %s54
      %s69 = sphi 0, %s55
      %s73 = sphi 0, %s73
      %s75 = sphi 0, %s73
      %s76 = sphi 0, %s75
      %s90 = sphi 0, %s76
      %s94 = sphi 0, %s94
      %s96 = sphi 0, %s94
      %s97 = sphi 0, %s96
      %s111 = sphi 0, %s97
      %s117 = sphi 0, %s119
      %s120 = sphi 0, %s117
      %s121 = sphi 0, %s120
      %s137 = sphi 0, %s121
    $region4: #{tpu_custom_call.1} parent=1 // loop_header_branch
      %21 = sbr.rel (%p19) target = $region8
    $region5: #{tpu_custom_call.1} parent=1 // loop_body
      %s23 = ssub.s32 %s18, 1
      %s24 = ssub.s32 %s18, 2
      %s25 = sadd.s32 %s18, 1
      %s26 = ssub.s32 %s18, %s25
      %p27 = scmp.eq.s32.totalorder %s26, 0
      %s29 = sadd.s32 %s28, 1
      %s30 = scalar_select %p27, %s28, %s29
      %p33 = pneg %p27
      %p34 = scmp.eq.s32.totalorder %s18, 1
      %p35 = por %p33, %p34
      %p36 = scmp.ne.s32.totalorder %s28, %s31
      %p37 = scmp.eq.s32.totalorder %s18, 0
      %p38 = por %p36, %p37
      %p39 = scmp.ne.s32.totalorder %s28, %s31
      %p40 = scmp.eq.s32.totalorder %s23, 1
      %p41 = por %p39, %p40
      %p42 = scmp.ne.s32.totalorder %s31, %s32
      %p43 = scmp.eq.s32.totalorder %s23, 0
      %p44 = por %p42, %p43
      %p45 = scmp.ne.s32.totalorder %s31, %s32
      %p46 = scmp.eq.s32.totalorder %s24, 1
      %p47 = por %p45, %p46
      %p49 = scmp.ne.s32.totalorder %s32, %s48
      %p50 = scmp.eq.s32.totalorder %s24, 0
      %p51 = por %p49, %p50
      %s53 = sadd.s32 %s52, 1
      %p56 = scmp.eq.s32.totalorder %s18, 1
      %p57 = scmp.ne.s32.totalorder %s52, %s54
      %p58 = scmp.eq.s32.totalorder %s18, 0
      %p59 = por %p57, %p58
      %p60 = scmp.ne.s32.totalorder %s52, %s54
      %p61 = scmp.eq.s32.totalorder %s23, 1
      %p62 = por %p60, %p61
      %p63 = scmp.ne.s32.totalorder %s54, %s55
      %p64 = scmp.eq.s32.totalorder %s23, 0
      %p65 = por %p63, %p64
      %p66 = scmp.ne.s32.totalorder %s54, %s55
      %p67 = scmp.eq.s32.totalorder %s24, 1
      %p68 = por %p66, %p67
      %p70 = scmp.ne.s32.totalorder %s55, %s69
      %p71 = scmp.eq.s32.totalorder %s24, 0
      %p72 = por %p70, %p71
      %s74 = sadd.s32 %s73, 1
      %p77 = scmp.eq.s32.totalorder %s18, 1
      %p78 = scmp.ne.s32.totalorder %s73, %s75
      %p79 = scmp.eq.s32.totalorder %s18, 0
      %p80 = por %p78, %p79
      %p81 = scmp.ne.s32.totalorder %s73, %s75
      %p82 = scmp.eq.s32.totalorder %s23, 1
      %p83 = por %p81, %p82
      %p84 = scmp.ne.s32.totalorder %s75, %s76
      %p85 = scmp.eq.s32.totalorder %s23, 0
      %p86 = por %p84, %p85
      %p87 = scmp.ne.s32.totalorder %s75, %s76
      %p88 = scmp.eq.s32.totalorder %s24, 1
      %p89 = por %p87, %p88
      %p91 = scmp.ne.s32.totalorder %s76, %s90
      %p92 = scmp.eq.s32.totalorder %s24, 0
      %p93 = por %p91, %p92
      %s95 = sadd.s32 %s94, 1
      %p98 = scmp.eq.s32.totalorder %s18, 1
      %p99 = scmp.ne.s32.totalorder %s94, %s96
      %p100 = scmp.eq.s32.totalorder %s18, 0
      %p101 = por %p99, %p100
      %p102 = scmp.ne.s32.totalorder %s94, %s96
      %p103 = scmp.eq.s32.totalorder %s23, 1
      %p104 = por %p102, %p103
      %p105 = scmp.ne.s32.totalorder %s96, %s97
      %p106 = scmp.eq.s32.totalorder %s23, 0
      %p107 = por %p105, %p106
      %p108 = scmp.ne.s32.totalorder %s96, %s97
      %p109 = scmp.eq.s32.totalorder %s24, 1
      %p110 = por %p108, %p109
      %p112 = scmp.ne.s32.totalorder %s97, %s111
      %p113 = scmp.eq.s32.totalorder %s24, 0
      %p114 = por %p112, %p113
      %s115 = ssub.s32 %s18, %s25
      %p116 = scmp.eq.s32.totalorder %s115, 0
      %s118 = sadd.s32 %s117, 1
      %s119 = scalar_select %p116, %s117, %s118
      %p122 = pneg %p116
      %p123 = scmp.eq.s32.totalorder %s18, 1
      %p124 = por %p122, %p123
      %p125 = scmp.ne.s32.totalorder %s117, %s120
      %p126 = scmp.eq.s32.totalorder %s18, 0
      %p127 = por %p125, %p126
      %p128 = scmp.ne.s32.totalorder %s117, %s120
      %p129 = scmp.eq.s32.totalorder %s23, 1
      %p130 = por %p128, %p129
      %p131 = scmp.ne.s32.totalorder %s120, %s121
      %p132 = scmp.eq.s32.totalorder %s23, 0
      %p133 = por %p131, %p132
      %p134 = scmp.ne.s32.totalorder %s120, %s121
      %p135 = scmp.eq.s32.totalorder %s24, 1
      %p136 = por %p134, %p135
      %p138 = scmp.ne.s32.totalorder %s121, %s137
      %p139 = scmp.eq.s32.totalorder %s24, 0
      %p140 = por %p138, %p139
      %p141 = scmp.le.s32.totalorder 1, %s18
      %p142 = scmp.lt.s32.totalorder %s18, 3
      %p143 = pnand %p141, %p142
      %p144 = pneg %p143
      // Predicated region
      $region9: #{tpu_custom_call.1} parent=5 // pred_check
        _
      $region10: #{tpu_custom_call.1} parent=5 // pred_check_branch
        %146 = sbr.rel (%p143) target = $region12
      $region11: #{tpu_custom_call.1} parent=5 // pred_region
        %s147 = ssub.s32 %s18, 1
        // Predicated region
        $region13: #{tpu_custom_call.1} parent=11 // pred_check
          %p148 = pneg %p65
        $region14: #{tpu_custom_call.1} parent=11 // pred_check_branch
          %150 = sbr.rel (%p148) target = $region16
        $region15: #{tpu_custom_call.1} parent=11 // pred_region
          %s152 = ssub.s32 128, 128
          %153 = vsyncadd [#allocation6], %s152
          %s155 = sshll.u32 [#allocation5], 4
          %s156 = int_to_ptr.vmem [resolvable:$true] %s155
          %158 = dma.hbm_to_vmem [thread:$0]  %s1, 128, %s156, [#allocation6]
        $region16: #{tpu_custom_call.1} parent=11 // pred_fallthru
          _
        // Predicated region
        $region17: #{tpu_custom_call.1} parent=11 // pred_check
          %p159 = pneg %p86
        $region18: #{tpu_custom_call.1} parent=11 // pred_check_branch
          %161 = sbr.rel (%p159) target = $region20
        $region19: #{tpu_custom_call.1} parent=11 // pred_region
          %s163 = ssub.s32 128, 128
          %164 = vsyncadd [#allocation6], %s163
          %s166 = sshll.u32 [#allocation7], 4
          %s167 = int_to_ptr.vmem [resolvable:$true] %s166
          %169 = dma.hbm_to_vmem [thread:$0]  %s2, 128, %s167, [#allocation6]
        $region20: #{tpu_custom_call.1} parent=11 // pred_fallthru
          _
        // Predicated region
        $region21: #{tpu_custom_call.1} parent=11 // pred_check
          %p170 = pneg %p107
        $region22: #{tpu_custom_call.1} parent=11 // pred_check_branch
          %172 = sbr.rel (%p170) target = $region24
        $region23: #{tpu_custom_call.1} parent=11 // pred_region
          %s174 = ssub.s32 2560, 2560
          %175 = vsyncadd [#allocation9], %s174
          %s176 = sshll.u32 [#allocation8], 4
          %s177 = int_to_ptr.vmem [resolvable:$true] %s176
          %182 = dma.hbm_to_vmem [thread:$0]  %s3, 2560, %s177, [#allocation9], 256, 256, 16
        $region24: #{tpu_custom_call.1} parent=11 // pred_fallthru
          _
      $region12: #{tpu_custom_call.1} parent=5 // pred_fallthru
        _
      %p183 = scmp.lt.s32.totalorder %s18, 2
      // Predicated region
      $region25: #{tpu_custom_call.1} parent=5 // pred_check
        %p184 = pneg %p183
      $region26: #{tpu_custom_call.1} parent=5 // pred_check_branch
        %186 = sbr.rel (%p184) target = $region28
      $region27: #{tpu_custom_call.1} parent=5 // pred_region
        // Predicated region
        $region29: #{tpu_custom_call.1} parent=27 // pred_check
          %p187 = pneg %p38
        $region30: #{tpu_custom_call.1} parent=27 // pred_check_branch
          %189 = sbr.rel (%p187) target = $region32
        $region31: #{tpu_custom_call.1} parent=27 // pred_region
          %s190 = sand.u32 %s28, 1
          %s191 = scalar_lea.sflag [#allocation3], %s190
          %s192 = sand.u32 %s28, 1
          %s193 = smul.addr %s192, 16
          %s194 = scalar_lea.vmem [#allocation2], %s193
          %s196 = ssub.s32 256, 256
          %197 = vsyncadd %s191, %s196
          %s198 = smul.addr %s18, 2
          %s199 = smul.addr %s198, 128
          %s200 = scalar_lea.hbm %s0, %s199
          %s202 = sshll.u32 %s194, 4
          %s203 = int_to_ptr.vmem [resolvable:$true] %s202
          %205 = dma.hbm_to_vmem [thread:$0]  %s200, 256, %s203, %s191
        $region32: #{tpu_custom_call.1} parent=27 // pred_fallthru
          _
      $region28: #{tpu_custom_call.1} parent=5 // pred_fallthru
        _
      %p206 = scmp.le.s32.totalorder 1, %s18
      %p207 = scmp.lt.s32.totalorder %s18, 3
      %p208 = pnand %p206, %p207
      %p209 = pneg %p208
      // Predicated region
      $region33: #{tpu_custom_call.1} parent=5 // pred_check
        _
      $region34: #{tpu_custom_call.1} parent=5 // pred_check_branch
        %211 = sbr.rel (%p208) target = $region36
      $region35: #{tpu_custom_call.1} parent=5 // pred_region
        %s212 = ssub.s32 %s18, 1
        %s213 = sand.u32 %s31, 1
        %s214 = scalar_lea.sflag [#allocation3], %s213
        %s215 = sand.u32 %s31, 1
        %s216 = smul.addr %s215, 16
        %s217 = scalar_lea.vmem [#allocation2], %s216
        // Predicated region
        $region37: #{tpu_custom_call.1} parent=35 // pred_check
          %p218 = pneg %p44
        $region38: #{tpu_custom_call.1} parent=35 // pred_check_branch
          %220 = sbr.rel (%p218) target = $region40
        $region39: #{tpu_custom_call.1} parent=35 // pred_region
          %221 = dma.done %s214, 256
        $region40: #{tpu_custom_call.1} parent=35 // pred_fallthru
          _
        // Predicated region
        $region41: #{tpu_custom_call.1} parent=35 // pred_check
          %p222 = pneg %p65
        $region42: #{tpu_custom_call.1} parent=35 // pred_check_branch
          %224 = sbr.rel (%p222) target = $region44
        $region43: #{tpu_custom_call.1} parent=35 // pred_region
          %225 = dma.done [#allocation6], 128
        $region44: #{tpu_custom_call.1} parent=35 // pred_fallthru
          _
        // Predicated region
        $region45: #{tpu_custom_call.1} parent=35 // pred_check
          %p226 = pneg %p86
        $region46: #{tpu_custom_call.1} parent=35 // pred_check_branch
          %228 = sbr.rel (%p226) target = $region48
        $region47: #{tpu_custom_call.1} parent=35 // pred_region
          %229 = dma.done [#allocation6], 128
        $region48: #{tpu_custom_call.1} parent=35 // pred_fallthru
          _
        // Predicated region
        $region49: #{tpu_custom_call.1} parent=35 // pred_check
          %p230 = pneg %p107
        $region50: #{tpu_custom_call.1} parent=35 // pred_check_branch
          %232 = sbr.rel (%p230) target = $region52
        $region51: #{tpu_custom_call.1} parent=35 // pred_region
          %233 = dma.done [#allocation9], 2560
        $region52: #{tpu_custom_call.1} parent=35 // pred_fallthru
          _
        %s234 = sand.u32 %s31, 1
        %s235 = scalar_lea.sflag [#allocation3], %s234
        %s236 = sand.u32 %s31, 1
        %s237 = smul.addr %s236, 16
        %s238 = scalar_lea.vmem [#allocation2], %s237
        %p239 = pneg %p44
        %p240 = pneg %p41
        %p241 = pneg %p65
        %p242 = pneg %p62
        %p243 = pneg %p86
        %p244 = pneg %p83
        %p245 = pneg %p107
        %p246 = pneg %p104
        %p247 = pneg %p133
        %p248 = pneg %p130
        %s249 = sand.u32 %s120, 1
        %s250 = scalar_lea.sflag [#allocation4], %s249
        %s251 = sand.u32 %s120, 1
        %s252 = smul.addr %s251, 16
        %s253 = scalar_lea.vmem [#allocation10], %s252
        %v254 = vld [vmem:[%s217] sm:$0xff]
        %v255 = vld [vmem:[%s217 + $0x8] sm:$0xff]
        %v256 = vld [vmem:[#allocation8] sm:$0xff]
        %v257 = vld [vmem:[#allocation8 + $0x8] sm:$0xff]
        %v258 = vld [vmem:[#allocation8 + $0x10] sm:$0xff]
        %v259 = vld [vmem:[#allocation8 + $0x18] sm:$0xff]
        %v260 = vld [vmem:[#allocation8 + $0x20] sm:$0xff]
        %v261 = vld [vmem:[#allocation8 + $0x28] sm:$0xff]
        %v262 = vld [vmem:[#allocation8 + $0x30] sm:$0xff]
        %v263 = vld [vmem:[#allocation8 + $0x38] sm:$0xff]
        %v264 = vld [vmem:[#allocation8 + $0x40] sm:$0xff]
        %v265 = vld [vmem:[#allocation8 + $0x48] sm:$0xff]
        %v266 = vld [vmem:[#allocation8 + $0x50] sm:$0xff]
        %v267 = vld [vmem:[#allocation8 + $0x58] sm:$0xff]
        %v268 = vld [vmem:[#allocation8 + $0x60] sm:$0xff]
        %v269 = vld [vmem:[#allocation8 + $0x68] sm:$0xff]
        %v270 = vld [vmem:[#allocation8 + $0x70] sm:$0xff]
        %v271 = vld [vmem:[#allocation8 + $0x78] sm:$0xff]
        %v272 = vld [vmem:[#allocation8 + $0x80] sm:$0xff]
        %v273 = vld [vmem:[#allocation8 + $0x88] sm:$0xff]
        %v274 = vld [vmem:[#allocation8 + $0x90] sm:$0xff]
        %v275 = vld [vmem:[#allocation8 + $0x98] sm:$0xff]
        %v276 = vld [vmem:[#allocation5] sm:$0xff]
        %v277 = vld [vmem:[#allocation7] sm:$0xff]
        %278 = vrot.lane.b32.xlu0 %v254, 17
        %v279 = vpop.permute.xlu0 %278
        %280 = vrot.lane.b32.xlu0 %v255, 17
        %v281 = vpop.permute.xlu0 %280
        %v282 = vlaneseq
        %v283 = vand.u32 %v282, 127
        %vm284 = vcmp.lt.s32.totalorder %v283, 17
        %v285 = vsel %vm284, %v279, %v281
        %v286 = vsel %vm284, %v281, %v279
        %287 = vrot.lane.b32.xlu0 %v254, 16
        %v288 = vpop.permute.xlu0 %287
        %289 = vrot.lane.b32.xlu0 %v255, 16
        %v290 = vpop.permute.xlu0 %289
        %vm291 = vcmp.lt.s32.totalorder %v283, 16
        %v292 = vsel %vm291, %v288, %v290
        %v293 = vsel %vm291, %v290, %v288
        %294 = vrot.lane.b32.xlu0 %v254, 15
        %v295 = vpop.permute.xlu0 %294
        %296 = vrot.lane.b32.xlu0 %v255, 15
        %v297 = vpop.permute.xlu0 %296
        %vm298 = vcmp.lt.s32.totalorder %v283, 15
        %v299 = vsel %vm298, %v295, %v297
        %v300 = vsel %vm298, %v297, %v295
        %301 = vrot.lane.b32.xlu0 %v254, 1
        %v302 = vpop.permute.xlu0 %301
        %303 = vrot.lane.b32.xlu0 %v255, 1
        %v304 = vpop.permute.xlu0 %303
        %vm305 = vcmp.lt.s32.totalorder %v283, 1
        %v306 = vsel %vm305, %v302, %v304
        %v307 = vsel %vm305, %v304, %v302
        %308 = vrot.lane.b32.xlu0 %v254, 127
        %v309 = vpop.permute.xlu0 %308
        %310 = vrot.lane.b32.xlu0 %v255, 127
        %v311 = vpop.permute.xlu0 %310
        %vm312 = vcmp.lt.s32.totalorder %v283, 127
        %v313 = vsel %vm312, %v309, %v311
        %v314 = vsel %vm312, %v311, %v309
        %315 = vrot.lane.b32.xlu0 %v254, 113
        %v316 = vpop.permute.xlu0 %315
        %317 = vrot.lane.b32.xlu0 %v255, 113
        %v318 = vpop.permute.xlu0 %317
        %vm319 = vcmp.lt.s32.totalorder %v283, 113
        %v320 = vsel %vm319, %v316, %v318
        %v321 = vsel %vm319, %v318, %v316
        %322 = vrot.lane.b32.xlu0 %v254, 112
        %v323 = vpop.permute.xlu0 %322
        %324 = vrot.lane.b32.xlu0 %v255, 112
        %v325 = vpop.permute.xlu0 %324
        %vm326 = vcmp.lt.s32.totalorder %v283, 112
        %v327 = vsel %vm326, %v323, %v325
        %v328 = vsel %vm326, %v325, %v323
        %329 = vrot.lane.b32.xlu0 %v254, 111
        %v330 = vpop.permute.xlu0 %329
        %331 = vrot.lane.b32.xlu0 %v255, 111
        %v332 = vpop.permute.xlu0 %331
        %vm333 = vcmp.lt.s32.totalorder %v283, 111
        %v334 = vsel %vm333, %v330, %v332
        %v335 = vsel %vm333, %v332, %v330
        %v336 = vmul.f32 %v286, %v256
        %v337 = vmul.f32 %v285, %v257
        %v338 = vmul.f32 %v293, %v258
        %v339 = vmul.f32 %v292, %v259
        %v340 = vmul.f32 %v300, %v260
        %v341 = vmul.f32 %v299, %v261
        %v342 = vmul.f32 %v307, %v262
        %v343 = vmul.f32 %v306, %v263
        %v344 = vmul.f32 %v254, %v264
        %v345 = vmul.f32 %v255, %v265
        %v346 = vmul.f32 %v313, %v266
        %v347 = vmul.f32 %v314, %v267
        %v348 = vmul.f32 %v320, %v268
        %v349 = vmul.f32 %v321, %v269
        %v350 = vmul.f32 %v327, %v270
        %v351 = vmul.f32 %v328, %v271
        %v352 = vmul.f32 %v334, %v272
        %v353 = vmul.f32 %v335, %v273
        %vm354 = vcmask 654336
        %v356 = vsel %vm354, %v276, 0
        %358 = vmatprep.subr.mxu0 %v337
        %359 = vmatpush1.msra.mxu0 %v336
        %360 = vmatprep.subr.mxu0 %v339
        %361 = vmatpush1.msra.mxu0 %v338
        %362 = vmatprep.subr.mxu0 %v341
        %363 = vmatpush1.msra.mxu0 %v340
        %364 = vmatprep.subr.mxu0 %v343
        %365 = vmatpush1.msra.mxu0 %v342
        %366 = vmatprep.subr.mxu0 %v345
        %367 = vmatpush1.msra.mxu0 %v344
        %368 = vmatprep.subr.mxu0 %v347
        %369 = vmatpush1.msra.mxu0 %v346
        %370 = vmatprep.subr.mxu0 %v349
        %371 = vmatpush1.msra.mxu0 %v348
        %372 = vmatprep.subr.mxu0 %v351
        %373 = vmatpush1.msra.mxu0 %v350
        %374 = vmatprep.subr.mxu0 %v353
        %375 = vmatpush1.msra.mxu0 %v352
        %376 = vmatprep.subr.mxu0 %v275
        %377 = vmatpush1.msra.mxu0 %v274
        %378 = vmatprep.subr.mxu0 0.0
        %379 = vmatpush1.msra.mxu0 0.0
        %380 = vmatprep.subr.mxu0 0.0
        %381 = vmatpush1.msra.mxu0 0.0
        %382 = vmatprep.subr.mxu0 0.0
        %383 = vmatpush1.msra.mxu0 0.0
        %384 = vmatprep.subr.mxu0 0.0
        %385 = vmatpush1.msra.mxu0 0.0
        %386 = vmatprep.subr.mxu0 0.0
        %387 = vmatpush1.msra.mxu0 0.0
        %388 = vmatprep.subr.mxu0 0.0
        %389 = vmatpush1.msra.mxu0 0.0
        %390 = vmatprep.subr.mxu0 0.0
        %391 = vmatpush1.msra.mxu0 0.0
        %392 = vmatprep.subr.mxu0 0.0
        %393 = vmatpush1.msra.mxu0 0.0
        %394 = vmatprep.subr.mxu0 0.0
        %395 = vmatpush1.msra.mxu0 0.0
        %396 = vmatprep.subr.mxu0 0.0
        %397 = vmatpush1.msra.mxu0 0.0
        %398 = vmatprep.subr.mxu0 0.0
        %399 = vmatpush1.msra.mxu0 0.0
        %400 = vmatprep.subr.mxu0 0.0
        %401 = vmatpush1.msra.mxu0 0.0
        %402 = vmatprep.subr.mxu0 0.0
        %403 = vmatpush1.msra.mxu0 0.0
        %404 = vmatprep.subr.mxu0 0.0
        %405 = vmatpush1.msra.mxu0 0.0
        %406 = vmatprep.subr.mxu0 0.0
        %407 = vmatpush1.msra.mxu0 0.0
        %408 = vmatprep.subr.mxu0 0.0
        %409 = vmatpush1.msra.mxu0 0.0
        %410 = vmatprep.subr.mxu0 0.0
        %411 = vmatpush1.msra.mxu0 0.0
        %412 = vmatprep.subr.mxu0 0.0
        %413 = vmatpush1.msra.mxu0 0.0
        %414 = vmatprep.subr.mxu0 0.0
        %415 = vmatpush1.msra.mxu0 0.0
        %416 = vmatprep.subr.mxu0 0.0
        %417 = vmatpush1.msra.mxu0 0.0
        %418 = vmatprep.subr.mxu0 0.0
        %419 = vmatpush1.msra.mxu0 0.0
        %420 = vmatprep.subr.mxu0 0.0
        %421 = vmatpush1.msra.mxu0 0.0
        %422 = vmatprep.mubr.f32.mxu0 0.0
        %423 = vmatmul.mubr.f32.gmra.mrb[0].mxu0 %v356
        %v424 = vpop.f32.mrb[0].mxu0
        %v425 = vadd.f32 0.0, %v424
        %v426 = vpop.f32.mrb[0].mxu0
        %v427 = vadd.f32 0.0, %v426
        %428 = vdwg.mxu0
        %v429 = vmax.f32 %v425, 0.0
        %v430 = vmax.f32 %v427, 0.0
        %431 = vrot.lane.b32.xlu0 %v429, 17
        %v432 = vpop.permute.xlu0 %431
        %433 = vrot.lane.b32.xlu0 %v430, 17
        %v434 = vpop.permute.xlu0 %433
        %v435 = vsel %vm284, %v432, %v434
        %v436 = vsel %vm284, %v434, %v432
        %437 = vrot.lane.b32.xlu0 %v429, 16
        %v438 = vpop.permute.xlu0 %437
        %439 = vrot.lane.b32.xlu0 %v430, 16
        %v440 = vpop.permute.xlu0 %439
        %v441 = vsel %vm291, %v438, %v440
        %v442 = vsel %vm291, %v440, %v438
        %443 = vrot.lane.b32.xlu0 %v429, 15
        %v444 = vpop.permute.xlu0 %443
        %445 = vrot.lane.b32.xlu0 %v430, 15
        %v446 = vpop.permute.xlu0 %445
        %v447 = vsel %vm298, %v444, %v446
        %v448 = vsel %vm298, %v446, %v444
        %449 = vrot.lane.b32.xlu0 %v429, 1
        %v450 = vpop.permute.xlu0 %449
        %451 = vrot.lane.b32.xlu0 %v430, 1
        %v452 = vpop.permute.xlu0 %451
        %v453 = vsel %vm305, %v450, %v452
        %v454 = vsel %vm305, %v452, %v450
        %455 = vrot.lane.b32.xlu0 %v429, 127
        %v456 = vpop.permute.xlu0 %455
        %457 = vrot.lane.b32.xlu0 %v430, 127
        %v458 = vpop.permute.xlu0 %457
        %v459 = vsel %vm312, %v456, %v458
        %v460 = vsel %vm312, %v458, %v456
        %461 = vrot.lane.b32.xlu0 %v429, 113
        %v462 = vpop.permute.xlu0 %461
        %463 = vrot.lane.b32.xlu0 %v430, 113
        %v464 = vpop.permute.xlu0 %463
        %v465 = vsel %vm319, %v462, %v464
        %v466 = vsel %vm319, %v464, %v462
        %467 = vrot.lane.b32.xlu0 %v429, 112
        %v468 = vpop.permute.xlu0 %467
        %469 = vrot.lane.b32.xlu0 %v430, 112
        %v470 = vpop.permute.xlu0 %469
        %v471 = vsel %vm326, %v468, %v470
        %v472 = vsel %vm326, %v470, %v468
        %473 = vrot.lane.b32.xlu0 %v429, 111
        %v474 = vpop.permute.xlu0 %473
        %475 = vrot.lane.b32.xlu0 %v430, 111
        %v476 = vpop.permute.xlu0 %475
        %v477 = vsel %vm333, %v474, %v476
        %v478 = vsel %vm333, %v476, %v474
        %v479 = vmul.f32 %v436, %v256
        %v480 = vmul.f32 %v435, %v257
        %v481 = vmul.f32 %v442, %v258
        %v482 = vmul.f32 %v441, %v259
        %v483 = vmul.f32 %v448, %v260
        %v484 = vmul.f32 %v447, %v261
        %v485 = vmul.f32 %v454, %v262
        %v486 = vmul.f32 %v453, %v263
        %v487 = vmul.f32 %v429, %v264
        %v488 = vmul.f32 %v430, %v265
        %v489 = vmul.f32 %v459, %v266
        %v490 = vmul.f32 %v460, %v267
        %v491 = vmul.f32 %v465, %v268
        %v492 = vmul.f32 %v466, %v269
        %v493 = vmul.f32 %v471, %v270
        %v494 = vmul.f32 %v472, %v271
        %v495 = vmul.f32 %v477, %v272
        %v496 = vmul.f32 %v478, %v273
        %v498 = vsel %vm354, %v277, 0
        %500 = vmatprep.subr.mxu0 %v480
        %501 = vmatpush1.msra.mxu0 %v479
        %502 = vmatprep.subr.mxu0 %v482
        %503 = vmatpush1.msra.mxu0 %v481
        %504 = vmatprep.subr.mxu0 %v484
        %505 = vmatpush1.msra.mxu0 %v483
        %506 = vmatprep.subr.mxu0 %v486
        %507 = vmatpush1.msra.mxu0 %v485
        %508 = vmatprep.subr.mxu0 %v488
        %509 = vmatpush1.msra.mxu0 %v487
        %510 = vmatprep.subr.mxu0 %v490
        %511 = vmatpush1.msra.mxu0 %v489
        %512 = vmatprep.subr.mxu0 %v492
        %513 = vmatpush1.msra.mxu0 %v491
        %514 = vmatprep.subr.mxu0 %v494
        %515 = vmatpush1.msra.mxu0 %v493
        %516 = vmatprep.subr.mxu0 %v496
        %517 = vmatpush1.msra.mxu0 %v495
        %518 = vmatprep.subr.mxu0 %v275
        %519 = vmatpush1.msra.mxu0 %v274
        %520 = vmatprep.subr.mxu0 0.0
        %521 = vmatpush1.msra.mxu0 0.0
        %522 = vmatprep.subr.mxu0 0.0
        %523 = vmatpush1.msra.mxu0 0.0
        %524 = vmatprep.subr.mxu0 0.0
        %525 = vmatpush1.msra.mxu0 0.0
        %526 = vmatprep.subr.mxu0 0.0
        %527 = vmatpush1.msra.mxu0 0.0
        %528 = vmatprep.subr.mxu0 0.0
        %529 = vmatpush1.msra.mxu0 0.0
        %530 = vmatprep.subr.mxu0 0.0
        %531 = vmatpush1.msra.mxu0 0.0
        %532 = vmatprep.subr.mxu0 0.0
        %533 = vmatpush1.msra.mxu0 0.0
        %534 = vmatprep.subr.mxu0 0.0
        %535 = vmatpush1.msra.mxu0 0.0
        %536 = vmatprep.subr.mxu0 0.0
        %537 = vmatpush1.msra.mxu0 0.0
        %538 = vmatprep.subr.mxu0 0.0
        %539 = vmatpush1.msra.mxu0 0.0
        %540 = vmatprep.subr.mxu0 0.0
        %541 = vmatpush1.msra.mxu0 0.0
        %542 = vmatprep.subr.mxu0 0.0
        %543 = vmatpush1.msra.mxu0 0.0
        %544 = vmatprep.subr.mxu0 0.0
        %545 = vmatpush1.msra.mxu0 0.0
        %546 = vmatprep.subr.mxu0 0.0
        %547 = vmatpush1.msra.mxu0 0.0
        %548 = vmatprep.subr.mxu0 0.0
        %549 = vmatpush1.msra.mxu0 0.0
        %550 = vmatprep.subr.mxu0 0.0
        %551 = vmatpush1.msra.mxu0 0.0
        %552 = vmatprep.subr.mxu0 0.0
        %553 = vmatpush1.msra.mxu0 0.0
        %554 = vmatprep.subr.mxu0 0.0
        %555 = vmatpush1.msra.mxu0 0.0
        %556 = vmatprep.subr.mxu0 0.0
        %557 = vmatpush1.msra.mxu0 0.0
        %558 = vmatprep.subr.mxu0 0.0
        %559 = vmatpush1.msra.mxu0 0.0
        %560 = vmatprep.subr.mxu0 0.0
        %561 = vmatpush1.msra.mxu0 0.0
        %562 = vmatprep.subr.mxu0 0.0
        %563 = vmatpush1.msra.mxu0 0.0
        %564 = vmatprep.mubr.f32.mxu0 0.0
        %565 = vmatmul.mubr.f32.gmra.mrb[0].mxu0 %v498
        %v566 = vpop.f32.mrb[0].mxu0
        %v567 = vadd.f32 %v254, %v566
        %v568 = vpop.f32.mrb[0].mxu0
        %v569 = vadd.f32 %v255, %v568
        %570 = vdwg.mxu0
        %v571 = vmax.f32 %v567, 0.0
        %v572 = vmax.f32 %v569, 0.0
        %573 = vst [vmem:[%s253] sm:$0xff] %v571
        %574 = vst [vmem:[%s253 + $0x8] sm:$0xff] %v572
        %s575 = sand.u32 %s120, 1
        %s576 = scalar_lea.sflag [#allocation4], %s575
        %s577 = sand.u32 %s120, 1
        %s578 = smul.addr %s577, 16
        %s579 = scalar_lea.vmem [#allocation10], %s578
        // Predicated region
        $region53: #{tpu_custom_call.1} parent=35 // pred_check
          %p580 = pneg %p130
        $region54: #{tpu_custom_call.1} parent=35 // pred_check_branch
          %582 = sbr.rel (%p580) target = $region56
        $region55: #{tpu_custom_call.1} parent=35 // pred_region
          %s584 = ssub.s32 256, 256
          %585 = vsyncadd %s576, %s584
          %s586 = smul.addr %s23, 2
          %s587 = smul.addr %s586, 128
          %s588 = scalar_lea.hbm %s4, %s587
          %s590 = sshll.u32 %s579, 4
          %s591 = int_to_ptr.vmem [resolvable:$true] %s590
          %593 = dma.vmem_to_hbm [thread:$0]  %s591, 256, %s588, %s576
        $region56: #{tpu_custom_call.1} parent=35 // pred_fallthru
          _
      $region36: #{tpu_custom_call.1} parent=5 // pred_fallthru
        _
      %p594 = scmp.le.s32.totalorder 2, %s18
      // Predicated region
      $region57: #{tpu_custom_call.1} parent=5 // pred_check
        %p595 = pneg %p594
      $region58: #{tpu_custom_call.1} parent=5 // pred_check_branch
        %597 = sbr.rel (%p595) target = $region60
      $region59: #{tpu_custom_call.1} parent=5 // pred_region
        %s598 = ssub.s32 %s18, 2
        // Predicated region
        $region61: #{tpu_custom_call.1} parent=59 // pred_check
          %p599 = pneg %p136
        $region62: #{tpu_custom_call.1} parent=59 // pred_check_branch
          %601 = sbr.rel (%p599) target = $region64
        $region63: #{tpu_custom_call.1} parent=59 // pred_region
          %s602 = sand.u32 %s121, 1
          %s603 = scalar_lea.sflag [#allocation4], %s602
          %s604 = sand.u32 %s121, 1
          %s605 = smul.addr %s604, 16
          %s606 = scalar_lea.vmem [#allocation10], %s605
          %607 = dma.done %s603, 256
        $region64: #{tpu_custom_call.1} parent=59 // pred_fallthru
          _
      $region60: #{tpu_custom_call.1} parent=5 // pred_fallthru
        _
    $region6: #{tpu_custom_call.1} parent=1 // loop_footer
      %s22 = sadd.s32 1, %s18
    $region7: #{tpu_custom_call.1} parent=1 // loop_footer_branch
      %17 = sbr.rel target = $region3
    $region8: #{tpu_custom_call.1} parent=1 // loop_exit
      _
    %608 = vsyncpa [#allocation3], 1
    %s609 = scalar_lea.sflag [#allocation3], 1
    %610 = vsyncpa %s609, 1
    %611 = vsyncpa [#allocation6], 1
    %612 = vsyncpa [#allocation9], 1
    %613 = vsyncpa [#allocation4], 1
    %s614 = scalar_lea.sflag [#allocation4], 1
    %615 = vsyncpa %s614, 1

</llo_original>
